<compile_context>
chip_gen: v7x
topology: tpu7x:2x2x1
jax: 0.10.0
libtpu: 0.0.40
codegen_flags: <defaults>
</compile_context>

<pallas_src>
import jax
import jax.numpy as jnp
from jax.experimental import pallas as pl
from jax.experimental.pallas import tpu as pltpu

SLOPE = 0.01


def _feature_extractor_kernel(a_tot_ref, eye_ref, mask_ref, u_ref,
                              w12_ref, b1_ref, w3_ref, out_ref, acc_ref):
    """Grid = (B, num_k_tiles).  Per-batch accumulation of [total; trace]."""
    t = pl.program_id(1)
    nt = pl.num_programs(1)

    @pl.when(t == 0)
    def _init():
        acc_ref[...] = jnp.zeros_like(acc_ref)

    # Coefficient tile for the flattened (i, j) positions of this k-tile:
    #   row 0: m_i * m_j                (-> masked total)
    #   row 1: m_i * m_j on the diagonal (= m_i^2) (-> masked trace)
    a_tot = a_tot_ref[...]                       # (1, TK)
    a_tr = a_tot * eye_ref[...]                  # (1, TK)
    coeff = jnp.concatenate([a_tot, a_tr], axis=0)   # (2, TK)

    # Masked double-sum as an MXU contraction: (2, TK) @ (TK, Fin) -> (2, Fin)
    acc_ref[...] += jnp.dot(coeff, u_ref[...],
                            preferred_element_type=jnp.float32)

    @pl.when(t == nt - 1)
    def _finalize():
        # n = number of valid nodes for this batch element.
        n = jnp.sum(mask_ref[...].astype(jnp.float32), axis=1, keepdims=True)  # (1, 1)
        acc = acc_ref[...]                       # (2, Fin) f32
        total = acc[0:1, :]
        trace = acc[1:2, :]
        # NOTE: n == 0 or n == 1 produces inf/nan exactly like the PyTorch
        # reference (no clamping is applied, to preserve semantics).
        x1 = trace / n
        s = (total - trace) / (n * (n - 1.0))

        # Fused head: [x1, s] @ [w1; w2] + b1
        xs = jnp.concatenate([x1, s], axis=1)    # (1, 2*Fin)
        out = jnp.dot(xs, w12_ref[...].astype(jnp.float32),
                      preferred_element_type=jnp.float32)
        out = out + b1_ref[...].astype(jnp.float32)

        # out = out + lin3(leaky_relu(out))
        act = jnp.where(out > 0, out, SLOPE * out)
        out = out + jnp.dot(act, w3_ref[...].astype(jnp.float32),
                            preferred_element_type=jnp.float32)

        out_ref[...] = out.astype(out_ref.dtype)


def _pick_tile_nn(nn, fin, itemsize, target_bytes=2 * 1024 * 1024):
    """Largest tile along the flattened N*N axis that divides N*N, is a
    multiple of 8, and keeps the u block around `target_bytes`."""
    budget = max(8, target_bytes // max(1, fin * itemsize))
    if nn <= budget:
        return nn
    best = None
    for cand in range(8, budget + 1, 8):
        if nn % cand == 0:
            best = cand
    return best if best is not None else nn


def feature_extractor(u, mask, w1, b1, w2, w3, *, tile_nn=None):
    """u: (B, N, N, Fin), mask: (B, N, 1) {0,1}, w1/w2: (Fin, Fout),
    b1: (Fout,) or (1, Fout), w3: (Fout, Fout).  Returns (B, Fout) f32."""
    B, N, N2, Fin = u.shape
    assert N == N2, "u must be (B, N, N, Fin)"
    Fout = w1.shape[-1]
    NN = N * N

    cdt = u.dtype
    isz = jnp.dtype(cdt).itemsize
    tk = tile_nn if tile_nn is not None else _pick_tile_nn(NN, Fin, isz)
    assert NN % tk == 0 and (tk == NN or tk % 8 == 0), \
        "tile_nn must divide N*N and be a multiple of 8"
    nt = NN // tk

    # ---- wrapper-side layout plumbing (all cheap / metadata-only for u) ----
    u_flat = u.reshape(B, NN, Fin)                              # flatten (i, j)

    mm = mask.reshape(B, N).astype(cdt)
    # flatten(m m^T) and flatten(I), pre-split into k-tiles so the BlockSpecs
    # deliver exactly the (1, TK) coefficient windows (hoisted diag selector).
    a_total = (mm[:, :, None] * mm[:, None, :]).reshape(B, nt, 1, tk)
    eye_t = jnp.eye(N, dtype=cdt).reshape(1, nt, 1, tk)
    mask_row = mask.reshape(B, 1, N).astype(jnp.float32)

    w12 = jnp.concatenate([w1, w2], axis=0).astype(jnp.float32)  # (2*Fin, Fout)
    b1_2d = jnp.reshape(b1, (1, Fout)).astype(jnp.float32)
    w3_2d = w3.astype(jnp.float32)

    # VMEM budget: double-buffered blocks + weights + scratch, with headroom.
    raw = (2 * tk * Fin * isz            # u tile (x2 buffers)
           + 2 * 2 * tk * isz            # a_total + eye tiles
           + 2 * N * 4                   # mask row
           + (2 * Fin * Fout + Fout + Fout * Fout) * 4   # weights
           + 2 * Fout * 4                # out block
           + 2 * Fin * 4)                # accumulator scratch
    vmem_limit = int(min(96 * 2 ** 20, max(8 * 2 ** 20, 2 * raw)))

    out3 = pl.pallas_call(
        _feature_extractor_kernel,
        out_shape=jax.ShapeDtypeStruct((B, 1, Fout), jnp.float32),
        grid=(B, nt),
        in_specs=[
            pl.BlockSpec((None, None, 1, tk), lambda b, t: (b, t, 0, 0)),  # m_i*m_j tile
            pl.BlockSpec((None, None, 1, tk), lambda b, t: (0, t, 0, 0)),  # diag selector tile
            pl.BlockSpec((None, 1, N), lambda b, t: (b, 0, 0)),            # mask row
            pl.BlockSpec((None, tk, Fin), lambda b, t: (b, t, 0)),         # u tile
            pl.BlockSpec((2 * Fin, Fout), lambda b, t: (0, 0)),            # fused [w1; w2]
            pl.BlockSpec((1, Fout), lambda b, t: (0, 0)),                  # b1
            pl.BlockSpec((Fout, Fout), lambda b, t: (0, 0)),               # w3
        ],
        out_specs=pl.BlockSpec((None, 1, Fout), lambda b, t: (b, 0, 0)),
        scratch_shapes=[pltpu.VMEM((2, Fin), jnp.float32)],
        compiler_params=pltpu.CompilerParams(
            dimension_semantics=("parallel", "arbitrary"),
            vmem_limit_bytes=vmem_limit,
        ),
    )(a_total, eye_t, mask_row, u_flat, w12, b1_2d, w3_2d)

    return out3.reshape(B, Fout)


def feature_extractor_ref(u, mask, w1, b1, w2, w3):
    """Pure-JAX reference mirroring the PyTorch forward."""
    um = u * mask[:, :, None] * mask[:, None, :]
    n = jnp.sum(mask, axis=1)                                   # (B, 1)
    trace = jnp.einsum("biif->bf", um)                          # (B, Fin)
    total = jnp.sum(um, axis=(1, 2))                            # (B, Fin)
    out1 = (trace / n) @ w1 + jnp.reshape(b1, (1, -1))
    s = (total - trace) / (n * (n - 1.0))
    out2 = s @ w2
    out = out1 + out2
    act = jnp.where(out > 0, out, SLOPE * out)
    return out + act @ w3


if __name__ == "__main__":
    B, N, Fin, Fout = 2, 16, 4, 32

    key = jax.random.PRNGKey(0)
    k_u, k_w1, k_b1, k_w2, k_w3 = jax.random.split(key, 5)

    u = jax.random.normal(k_u, (B, N, N, Fin), dtype=jnp.float32)

    # deterministic node mask: batch 0 has 12 valid nodes, batch 1 has 16
    num_nodes = jnp.array([12, 16], dtype=jnp.int32)
    node_idx = jnp.arange(N, dtype=jnp.int32)
    mask = (node_idx[None, :] < num_nodes[:, None]).astype(jnp.float32)
    mask = mask[:, :, None]                                     # (B, N, 1)

    # Parameters (torch Linear weight is (out,in); stored here as (in,out))
    w1 = 0.1 * jax.random.normal(k_w1, (Fin, Fout), dtype=jnp.float32)
    b1 = 0.1 * jax.random.normal(k_b1, (1, Fout), dtype=jnp.float32)
    w2 = 0.1 * jax.random.normal(k_w2, (Fin, Fout), dtype=jnp.float32)
    w3 = 0.1 * jax.random.normal(k_w3, (Fout, Fout), dtype=jnp.float32)

    # tile_nn=128 -> 2 reduction steps per batch: exercises init/accumulate/
    # finalize and the double-buffered pipeline even at this toy size.
    out = feature_extractor(u, mask, w1, b1, w2, w3, tile_nn=128)
    out = jax.block_until_ready(out)

    ref = feature_extractor_ref(u, mask, w1, b1, w2, w3)
    assert out.shape == (B, Fout)
    assert jnp.allclose(out, ref, rtol=1e-4, atol=1e-4), "mismatch vs reference"

    print("KERNEL_OK")
</pallas_src>

<mosaic_0001>
module attributes {stable_mosaic.version = 11 : i64} {
  func.func @_feature_extractor_kernel(%arg0: i32, %arg1: i32, %arg2: memref<1x1x1x128xf32, #tpu.memory_space<vmem>>, %arg3: memref<1x1x1x128xf32, #tpu.memory_space<vmem>>, %arg4: memref<1x1x16xf32, #tpu.memory_space<vmem>>, %arg5: memref<1x128x4xf32, #tpu.memory_space<vmem>>, %arg6: memref<8x32xf32, #tpu.memory_space<vmem>>, %arg7: memref<1x32xf32, #tpu.memory_space<vmem>>, %arg8: memref<32x32xf32, #tpu.memory_space<vmem>>, %arg9: memref<1x1x32xf32, #tpu.memory_space<vmem>>, %arg10: memref<2x4xf32, #tpu.memory_space<vmem>>) attributes {dimension_semantics = [#tpu.dimension_semantics<parallel>, #tpu.dimension_semantics<arbitrary>], iteration_bounds = array<i64: 2, 2>, scalar_prefetch = 0 : i64, scratch_operands = 1 : i64, tpu.core_type = #tpu.core_type<tc>, window_params = [{transform_indices = @transform_0, window_bounds = array<i64: 1, 1, 1, 128>}, {transform_indices = @transform_1, window_bounds = array<i64: 1, 1, 1, 128>}, {transform_indices = @transform_2, window_bounds = array<i64: 1, 1, 16>}, {transform_indices = @transform_3, window_bounds = array<i64: 1, 128, 4>}, {pipeline_mode = #tpu.pipeline_mode<synchronous>, transform_indices = @transform_4, window_bounds = array<i64: 8, 32>}, {pipeline_mode = #tpu.pipeline_mode<synchronous>, transform_indices = @transform_5, window_bounds = array<i64: 1, 32>}, {pipeline_mode = #tpu.pipeline_mode<synchronous>, transform_indices = @transform_6, window_bounds = array<i64: 32, 32>}, {transform_indices = @transform_7, window_bounds = array<i64: 1, 1, 32>}]} {
    %c0_i32 = arith.constant 0 : i32
    %0 = arith.cmpi eq, %arg1, %c0_i32 : i32
    %1 = arith.extui %0 : i1 to i32
    %c0_i32_0 = arith.constant 0 : i32
    %2 = arith.cmpi ne, %1, %c0_i32_0 : i32
    scf.if %2 {
      %cst_16 = arith.constant 0.000000e+00 : f32
      %18 = vector.broadcast %cst_16 : f32 to vector<2x4xf32>
      %c0_17 = arith.constant 0 : index
      %c0_18 = arith.constant 0 : index
      %19 = vector.load %arg10[%c0_17, %c0_18] : memref<2x4xf32, #tpu.memory_space<vmem>>, vector<2x4xf32>
      tpu.vector_store %arg10[%c0_17, %c0_18], %18 {strides = array<i32>} : memref<2x4xf32, #tpu.memory_space<vmem>>, vector<2x4xf32>,
    } else {
    }
    %c0 = arith.constant 0 : index
    %c0_1 = arith.constant 0 : index
    %c0_2 = arith.constant 0 : index
    %c0_3 = arith.constant 0 : index
    %3 = vector.load %arg2[%c0, %c0_1, %c0_2, %c0_3] : memref<1x1x1x128xf32, #tpu.memory_space<vmem>>, vector<1x1x1x128xf32>
    %4 = vector.shape_cast %3 : vector<1x1x1x128xf32> to vector<1x128xf32>
    %c0_4 = arith.constant 0 : index
    %c0_5 = arith.constant 0 : index
    %c0_6 = arith.constant 0 : index
    %c0_7 = arith.constant 0 : index
    %5 = vector.load %arg3[%c0_4, %c0_5, %c0_6, %c0_7] : memref<1x1x1x128xf32, #tpu.memory_space<vmem>>, vector<1x1x1x128xf32>
    %6 = vector.shape_cast %5 : vector<1x1x1x128xf32> to vector<1x128xf32>
    %7 = arith.mulf %4, %6 : vector<1x128xf32>
    %8 = tpu.concatenate %4, %7 in 0 : vector<1x128xf32>, vector<1x128xf32> -> vector<2x128xf32>
    %c0_8 = arith.constant 0 : index
    %c0_9 = arith.constant 0 : index
    %9 = vector.load %arg10[%c0_8, %c0_9] : memref<2x4xf32, #tpu.memory_space<vmem>>, vector<2x4xf32>
    %c0_10 = arith.constant 0 : index
    %c0_11 = arith.constant 0 : index
    %c0_12 = arith.constant 0 : index
    %10 = vector.load %arg5[%c0_10, %c0_11, %c0_12] : memref<1x128x4xf32, #tpu.memory_space<vmem>>, vector<1x128x4xf32>
    %11 = vector.shape_cast %10 : vector<1x128x4xf32> to vector<128x4xf32>
    %cst = arith.constant dense<0.000000e+00> : vector<2x4xf32>
    %12 = tpu.matmul %8, %11, %cst {dimension_numbers = #tpu.dot_dimension_numbers<[1], [0], [0], [1], [0, 0, 1, 1], [], []>} : vector<2x128xf32>, vector<128x4xf32>, vector<2x4xf32> -> vector<2x4xf32>
    %13 = arith.addf %9, %12 : vector<2x4xf32>
    %c0_13 = arith.constant 0 : index
    %c0_14 = arith.constant 0 : index
    %14 = vector.load %arg10[%c0_13, %c0_14] : memref<2x4xf32, #tpu.memory_space<vmem>>, vector<2x4xf32>
    tpu.vector_store %arg10[%c0_13, %c0_14], %13 {strides = array<i32>} : memref<2x4xf32, #tpu.memory_space<vmem>>, vector<2x4xf32>,
    %c1_i32 = arith.constant 1 : i32
    %15 = arith.cmpi eq, %arg1, %c1_i32 : i32
    %16 = arith.extui %15 : i1 to i32
    %c0_i32_15 = arith.constant 0 : i32
    %17 = arith.cmpi ne, %16, %c0_i32_15 : i32
    scf.if %17 {
      %c0_16 = arith.constant 0 : index
      %c0_17 = arith.constant 0 : index
      %c0_18 = arith.constant 0 : index
      %18 = vector.load %arg4[%c0_16, %c0_17, %c0_18] : memref<1x1x16xf32, #tpu.memory_space<vmem>>, vector<1x1x16xf32>
      %19 = vector.shape_cast %18 : vector<1x1x16xf32> to vector<1x16xf32>
      %cst_19 = arith.constant dense<0.000000e+00> : vector<1xf32>
      %20 = vector.multi_reduction <add>, %19, %cst_19 [1] : vector<1x16xf32> to vector<1xf32>
      %21 = vector.shape_cast %20 : vector<1xf32> to vector<1x1xf32>
      %c0_20 = arith.constant 0 : index
      %c0_21 = arith.constant 0 : index
      %22 = vector.load %arg10[%c0_20, %c0_21] : memref<2x4xf32, #tpu.memory_space<vmem>>, vector<2x4xf32>
      %23 = vector.extract_strided_slice %22 {offsets = [0, 0], sizes = [1, 4], strides = [1, 1]} : vector<2x4xf32> to vector<1x4xf32>
      %24 = vector.extract_strided_slice %22 {offsets = [1, 0], sizes = [1, 4], strides = [1, 1]} : vector<2x4xf32> to vector<1x4xf32>
      %25 = vector.broadcast %21 : vector<1x1xf32> to vector<1x4xf32>
      %26 = arith.divf %24, %25 : vector<1x4xf32>
      %27 = arith.subf %23, %24 : vector<1x4xf32>
      %cst_22 = arith.constant 1.000000e+00 : f32
      %28 = vector.broadcast %cst_22 : f32 to vector<1x1xf32>
      %29 = arith.subf %21, %28 : vector<1x1xf32>
      %30 = arith.mulf %21, %29 : vector<1x1xf32>
      %31 = vector.broadcast %30 : vector<1x1xf32> to vector<1x4xf32>
      %32 = arith.divf %27, %31 : vector<1x4xf32>
      %33 = tpu.concatenate %26, %32 in 1 : vector<1x4xf32>, vector<1x4xf32> -> vector<1x8xf32>
      %c0_23 = arith.constant 0 : index
      %c0_24 = arith.constant 0 : index
      %34 = vector.load %arg6[%c0_23, %c0_24] : memref<8x32xf32, #tpu.memory_space<vmem>>, vector<8x32xf32>
      %cst_25 = arith.constant dense<0.000000e+00> : vector<1x32xf32>
      %35 = tpu.matmul %33, %34, %cst_25 {dimension_numbers = #tpu.dot_dimension_numbers<[1], [0], [0], [1], [0, 0, 1, 1], [], []>} : vector<1x8xf32>, vector<8x32xf32>, vector<1x32xf32> -> vector<1x32xf32>
      %c0_26 = arith.constant 0 : index
      %c0_27 = arith.constant 0 : index
      %36 = vector.load %arg7[%c0_26, %c0_27] : memref<1x32xf32, #tpu.memory_space<vmem>>, vector<1x32xf32>
      %37 = arith.addf %35, %36 : vector<1x32xf32>
      %cst_28 = arith.constant 0.000000e+00 : f32
      %38 = vector.broadcast %cst_28 : f32 to vector<1x32xf32>
      %39 = arith.cmpf ogt, %37, %38 : vector<1x32xf32>
      %cst_29 = arith.constant 0.00999999977 : f32
      %40 = vector.broadcast %cst_29 : f32 to vector<1x32xf32>
      %41 = arith.mulf %40, %37 : vector<1x32xf32>
      %42 = arith.select %39, %37, %41 : vector<1x32xi1>, vector<1x32xf32>
      %c0_30 = arith.constant 0 : index
      %c0_31 = arith.constant 0 : index
      %43 = vector.load %arg8[%c0_30, %c0_31] : memref<32x32xf32, #tpu.memory_space<vmem>>, vector<32x32xf32>
      %cst_32 = arith.constant dense<0.000000e+00> : vector<1x32xf32>
      %44 = tpu.matmul %42, %43, %cst_32 {dimension_numbers = #tpu.dot_dimension_numbers<[1], [0], [0], [1], [0, 0, 1, 1], [], []>} : vector<1x32xf32>, vector<32x32xf32>, vector<1x32xf32> -> vector<1x32xf32>
      %45 = arith.addf %37, %44 : vector<1x32xf32>
      %c0_33 = arith.constant 0 : index
      %c0_34 = arith.constant 0 : index
      %c0_35 = arith.constant 0 : index
      %46 = vector.load %arg9[%c0_33, %c0_34, %c0_35] : memref<1x1x32xf32, #tpu.memory_space<vmem>>, vector<1x1x32xf32>
      %47 = vector.shape_cast %46 : vector<1x1x32xf32> to vector<1x32xf32>
      %48 = vector.shape_cast %45 : vector<1x32xf32> to vector<1x1x32xf32>
      tpu.vector_store %arg9[%c0_33, %c0_34, %c0_35], %48 {strides = array<i32>} : memref<1x1x32xf32, #tpu.memory_space<vmem>>, vector<1x1x32xf32>,
    } else {
    }
    return
  }
  func.func @transform_0(%arg0: i32, %arg1: i32) -> (i32, i32, i32, i32) {
    %c0_i32 = arith.constant 0 : i32
    %c0_i32_0 = arith.constant 0 : i32
    %c0_i32_1 = arith.constant 0 : i32
    return %arg0, %arg1, %c0_i32, %c0_i32_0 : i32, i32, i32, i32
  }
  func.func @transform_1(%arg0: i32, %arg1: i32) -> (i32, i32, i32, i32) {
    %c0_i32 = arith.constant 0 : i32
    %c0_i32_0 = arith.constant 0 : i32
    %c0_i32_1 = arith.constant 0 : i32
    %c0_i32_2 = arith.constant 0 : i32
    return %c0_i32, %arg1, %c0_i32_0, %c0_i32_1 : i32, i32, i32, i32
  }
  func.func @transform_2(%arg0: i32, %arg1: i32) -> (i32, i32, i32) {
    %c0_i32 = arith.constant 0 : i32
    %c0_i32_0 = arith.constant 0 : i32
    %c0_i32_1 = arith.constant 0 : i32
    return %arg0, %c0_i32, %c0_i32_0 : i32, i32, i32
  }
  func.func @transform_3(%arg0: i32, %arg1: i32) -> (i32, i32, i32) {
    %c0_i32 = arith.constant 0 : i32
    %c0_i32_0 = arith.constant 0 : i32
    return %arg0, %arg1, %c0_i32 : i32, i32, i32
  }
  func.func @transform_4(%arg0: i32, %arg1: i32) -> (i32, i32) {
    %c0_i32 = arith.constant 0 : i32
    %c0_i32_0 = arith.constant 0 : i32
    %c0_i32_1 = arith.constant 0 : i32
    return %c0_i32, %c0_i32_0 : i32, i32
  }
  func.func @transform_5(%arg0: i32, %arg1: i32) -> (i32, i32) {
    %c0_i32 = arith.constant 0 : i32
    %c0_i32_0 = arith.constant 0 : i32
    %c0_i32_1 = arith.constant 0 : i32
    return %c0_i32, %c0_i32_0 : i32, i32
  }
  func.func @transform_6(%arg0: i32, %arg1: i32) -> (i32, i32) {
    %c0_i32 = arith.constant 0 : i32
    %c0_i32_0 = arith.constant 0 : i32
    %c0_i32_1 = arith.constant 0 : i32
    return %c0_i32, %c0_i32_0 : i32, i32
  }
  func.func @transform_7(%arg0: i32, %arg1: i32) -> (i32, i32, i32) {
    %c0_i32 = arith.constant 0 : i32
    %c0_i32_0 = arith.constant 0 : i32
    %c0_i32_1 = arith.constant 0 : i32
    return %arg0, %c0_i32, %c0_i32_0 : i32, i32, i32
  }
}

</mosaic_0001>

<llo_original>
// kernel: tpu_custom_call.1
$region0: #{tpu_custom_call.1}
  #allocation0 [shape = 'u32[]', space=smem, size = 0x4, offset = 0x4, fixed_abs, tag = 'smem constant byte address 0x4 - core index']
  #allocation1 [shape = 'u32[144,128]{1,0:T(1,128)}', space=vmem, size = 0x12000, scoped, tag = 'internal scratch']
  #allocation2 [shape = 'f32[2,4]{1,0:T(2,128)}', space=vmem, size = 0x400, scoped, tag = 'scratch operand']
  %s0 = inlined_call_operand.vmem [shape: f32[2,2,1,128], index: 0, kind: input, shape index: {}]
  %s1 = inlined_call_operand.vmem [shape: f32[1,2,1,128], index: 1, kind: input, shape index: {}]
  %s2 = inlined_call_operand.vmem [shape: f32[2,1,16], index: 2, kind: input, shape index: {}]
  %s3 = inlined_call_operand.vmem [shape: f32[2,256,4], index: 3, kind: input, shape index: {}]
  %s4 = inlined_call_operand.vmem [shape: f32[8,32], index: 4, kind: input, shape index: {}]
  %s5 = inlined_call_operand.vmem [shape: f32[1,32], index: 5, kind: input, shape index: {}]
  %s6 = inlined_call_operand.vmem [shape: f32[32,32], index: 6, kind: input, shape index: {}]
  %s7 = inlined_call_operand.hbm [shape: f32[2,1,32], index: 7, kind: output, shape index: {}]
  %s8 = sld [smem:[#allocation0]]
  $region69: #{tpu_custom_call.1} parent=0
    _
  %s10 = ssub.s32 1, %s8
  %s11 = scalar_select 0, %s10, %s8
  $region1: #{tpu_custom_call.1} parent=0
    #allocation3 [shape = 'u8[1024]{0}', space=vmem, size = 0x400, scoped, tag = 'output window, operand 0']
    #allocation4 [shape = 's32[2]{0}', space=sflag, size = 0x8, scoped, tag = 'scoped memory for tpu_custom_call.1']
    %12 = vsyncpa [#allocation4], 0
    %s13 = scalar_lea.sflag [#allocation4], 1
    %14 = vsyncpa %s13, 0
    loop: start=0, step=1, limit=6
    $region2: #{tpu_custom_call.1} parent=1 // loop_pre_header
      _
    $region3: #{tpu_custom_call.1} parent=1 // loop_header
      %s16 = sphi 0, %s20
      %p17 = scmp.ge.s32.totalorder %s16, 6
      %s23 = sphi 0, %s35
      %s24 = sphi 0, %s31
      %s25 = sphi 0, %s23
      %s26 = sphi 0, %s24
      %s27 = sphi 0, %s25
      %s28 = sphi 0, %s26
      %s40 = sphi 0, %s42
      %s43 = sphi 0, %s40
      %s44 = sphi 0, %s43
      %s60 = sphi 0, %s44
      %s66 = sphi 0, %s68
      %s69 = sphi 0, %s66
      %s70 = sphi 0, %s69
      %s86 = sphi 0, %s70
      %s92 = sphi 0, %s94
      %s95 = sphi 0, %s92
      %s96 = sphi 0, %s95
      %s112 = sphi 0, %s96
      %s120 = sphi 0, %s122
      %s123 = sphi 0, %s120
      %s124 = sphi 0, %s123
      %s140 = sphi 0, %s124
      %s144 = sphi 0, %s144
      %s146 = sphi 0, %s144
      %s147 = sphi 0, %s146
      %s161 = sphi 0, %s147
      %s165 = sphi 0, %s165
      %s167 = sphi 0, %s165
      %s168 = sphi 0, %s167
      %s182 = sphi 0, %s168
      %s186 = sphi 0, %s186
      %s188 = sphi 0, %s186
      %s189 = sphi 0, %s188
      %s203 = sphi 0, %s189
      %s209 = sphi 0, %s211
      %s212 = sphi 0, %s209
      %s213 = sphi 0, %s212
      %s229 = sphi 0, %s213
    $region4: #{tpu_custom_call.1} parent=1 // loop_header_branch
      %19 = sbr.rel (%p17) target = $region8
    $region5: #{tpu_custom_call.1} parent=1 // loop_body
      %s21 = ssub.s32 %s16, 1
      %s22 = ssub.s32 %s16, 2
      %s29 = sadd.s32 1, %s24
      %p30 = scmp.ge.s32.totalorder %s29, 2
      %s31 = scalar_select %p30, 0, %s29
      %s32 = sadd.s32 1, %s23
      %s33 = scalar_select %p30, %s32, %s23
      %p34 = scmp.ge.s32.totalorder %s33, 2
      %s35 = scalar_select %p34, 0, %s33
      %s36 = ssub.s32 %s23, %s35
      %s37 = ssub.s32 %s24, %s31
      %s38 = sor.u32 %s36, %s37
      %p39 = scmp.eq.s32.totalorder %s38, 0
      %s41 = sadd.s32 %s40, 1
      %s42 = scalar_select %p39, %s40, %s41
      %p45 = pneg %p39
      %p46 = scmp.eq.s32.totalorder %s16, 3
      %p47 = por %p45, %p46
      %p48 = scmp.ne.s32.totalorder %s40, %s43
      %p49 = scmp.eq.s32.totalorder %s16, 0
      %p50 = por %p48, %p49
      %p51 = scmp.ne.s32.totalorder %s40, %s43
      %p52 = scmp.eq.s32.totalorder %s21, 3
      %p53 = por %p51, %p52
      %p54 = scmp.ne.s32.totalorder %s43, %s44
      %p55 = scmp.eq.s32.totalorder %s21, 0
      %p56 = por %p54, %p55
      %p57 = scmp.ne.s32.totalorder %s43, %s44
      %p58 = scmp.eq.s32.totalorder %s22, 3
      %p59 = por %p57, %p58
      %p61 = scmp.ne.s32.totalorder %s44, %s60
      %p62 = scmp.eq.s32.totalorder %s22, 0
      %p63 = por %p61, %p62
      %s64 = ssub.s32 %s24, %s31
      %p65 = scmp.eq.s32.totalorder %s64, 0
      %s67 = sadd.s32 %s66, 1
      %s68 = scalar_select %p65, %s66, %s67
      %p71 = pneg %p65
      %p72 = scmp.eq.s32.totalorder %s16, 3
      %p73 = por %p71, %p72
      %p74 = scmp.ne.s32.totalorder %s66, %s69
      %p75 = scmp.eq.s32.totalorder %s16, 0
      %p76 = por %p74, %p75
      %p77 = scmp.ne.s32.totalorder %s66, %s69
      %p78 = scmp.eq.s32.totalorder %s21, 3
      %p79 = por %p77, %p78
      %p80 = scmp.ne.s32.totalorder %s69, %s70
      %p81 = scmp.eq.s32.totalorder %s21, 0
      %p82 = por %p80, %p81
      %p83 = scmp.ne.s32.totalorder %s69, %s70
      %p84 = scmp.eq.s32.totalorder %s22, 3
      %p85 = por %p83, %p84
      %p87 = scmp.ne.s32.totalorder %s70, %s86
      %p88 = scmp.eq.s32.totalorder %s22, 0
      %p89 = por %p87, %p88
      %s90 = ssub.s32 %s23, %s35
      %p91 = scmp.eq.s32.totalorder %s90, 0
      %s93 = sadd.s32 %s92, 1
      %s94 = scalar_select %p91, %s92, %s93
      %p97 = pneg %p91
      %p98 = scmp.eq.s32.totalorder %s16, 3
      %p99 = por %p97, %p98
      %p100 = scmp.ne.s32.totalorder %s92, %s95
      %p101 = scmp.eq.s32.totalorder %s16, 0
      %p102 = por %p100, %p101
      %p103 = scmp.ne.s32.totalorder %s92, %s95
      %p104 = scmp.eq.s32.totalorder %s21, 3
      %p105 = por %p103, %p104
      %p106 = scmp.ne.s32.totalorder %s95, %s96
      %p107 = scmp.eq.s32.totalorder %s21, 0
      %p108 = por %p106, %p107
      %p109 = scmp.ne.s32.totalorder %s95, %s96
      %p110 = scmp.eq.s32.totalorder %s22, 3
      %p111 = por %p109, %p110
      %p113 = scmp.ne.s32.totalorder %s96, %s112
      %p114 = scmp.eq.s32.totalorder %s22, 0
      %p115 = por %p113, %p114
      %s116 = ssub.s32 %s23, %s35
      %s117 = ssub.s32 %s24, %s31
      %s118 = sor.u32 %s116, %s117
      %p119 = scmp.eq.s32.totalorder %s118, 0
      %s121 = sadd.s32 %s120, 1
      %s122 = scalar_select %p119, %s120, %s121
      %p125 = pneg %p119
      %p126 = scmp.eq.s32.totalorder %s16, 3
      %p127 = por %p125, %p126
      %p128 = scmp.ne.s32.totalorder %s120, %s123
      %p129 = scmp.eq.s32.totalorder %s16, 0
      %p130 = por %p128, %p129
      %p131 = scmp.ne.s32.totalorder %s120, %s123
      %p132 = scmp.eq.s32.totalorder %s21, 3
      %p133 = por %p131, %p132
      %p134 = scmp.ne.s32.totalorder %s123, %s124
      %p135 = scmp.eq.s32.totalorder %s21, 0
      %p136 = por %p134, %p135
      %p137 = scmp.ne.s32.totalorder %s123, %s124
      %p138 = scmp.eq.s32.totalorder %s22, 3
      %p139 = por %p137, %p138
      %p141 = scmp.ne.s32.totalorder %s124, %s140
      %p142 = scmp.eq.s32.totalorder %s22, 0
      %p143 = por %p141, %p142
      %s145 = sadd.s32 %s144, 1
      %p148 = scmp.eq.s32.totalorder %s16, 3
      %p149 = scmp.ne.s32.totalorder %s144, %s146
      %p150 = scmp.eq.s32.totalorder %s16, 0
      %p151 = por %p149, %p150
      %p152 = scmp.ne.s32.totalorder %s144, %s146
      %p153 = scmp.eq.s32.totalorder %s21, 3
      %p154 = por %p152, %p153
      %p155 = scmp.ne.s32.totalorder %s146, %s147
      %p156 = scmp.eq.s32.totalorder %s21, 0
      %p157 = por %p155, %p156
      %p158 = scmp.ne.s32.totalorder %s146, %s147
      %p159 = scmp.eq.s32.totalorder %s22, 3
      %p160 = por %p158, %p159
      %p162 = scmp.ne.s32.totalorder %s147, %s161
      %p163 = scmp.eq.s32.totalorder %s22, 0
      %p164 = por %p162, %p163
      %s166 = sadd.s32 %s165, 1
      %p169 = scmp.eq.s32.totalorder %s16, 3
      %p170 = scmp.ne.s32.totalorder %s165, %s167
      %p171 = scmp.eq.s32.totalorder %s16, 0
      %p172 = por %p170, %p171
      %p173 = scmp.ne.s32.totalorder %s165, %s167
      %p174 = scmp.eq.s32.totalorder %s21, 3
      %p175 = por %p173, %p174
      %p176 = scmp.ne.s32.totalorder %s167, %s168
      %p177 = scmp.eq.s32.totalorder %s21, 0
      %p178 = por %p176, %p177
      %p179 = scmp.ne.s32.totalorder %s167, %s168
      %p180 = scmp.eq.s32.totalorder %s22, 3
      %p181 = por %p179, %p180
      %p183 = scmp.ne.s32.totalorder %s168, %s182
      %p184 = scmp.eq.s32.totalorder %s22, 0
      %p185 = por %p183, %p184
      %s187 = sadd.s32 %s186, 1
      %p190 = scmp.eq.s32.totalorder %s16, 3
      %p191 = scmp.ne.s32.totalorder %s186, %s188
      %p192 = scmp.eq.s32.totalorder %s16, 0
      %p193 = por %p191, %p192
      %p194 = scmp.ne.s32.totalorder %s186, %s188
      %p195 = scmp.eq.s32.totalorder %s21, 3
      %p196 = por %p194, %p195
      %p197 = scmp.ne.s32.totalorder %s188, %s189
      %p198 = scmp.eq.s32.totalorder %s21, 0
      %p199 = por %p197, %p198
      %p200 = scmp.ne.s32.totalorder %s188, %s189
      %p201 = scmp.eq.s32.totalorder %s22, 3
      %p202 = por %p200, %p201
      %p204 = scmp.ne.s32.totalorder %s189, %s203
      %p205 = scmp.eq.s32.totalorder %s22, 0
      %p206 = por %p204, %p205
      %s207 = ssub.s32 %s23, %s35
      %p208 = scmp.eq.s32.totalorder %s207, 0
      %s210 = sadd.s32 %s209, 1
      %s211 = scalar_select %p208, %s209, %s210
      %p214 = pneg %p208
      %p215 = scmp.eq.s32.totalorder %s16, 3
      %p216 = por %p214, %p215
      %p217 = scmp.ne.s32.totalorder %s209, %s212
      %p218 = scmp.eq.s32.totalorder %s16, 0
      %p219 = por %p217, %p218
      %p220 = scmp.ne.s32.totalorder %s209, %s212
      %p221 = scmp.eq.s32.totalorder %s21, 3
      %p222 = por %p220, %p221
      %p223 = scmp.ne.s32.totalorder %s212, %s213
      %p224 = scmp.eq.s32.totalorder %s21, 0
      %p225 = por %p223, %p224
      %p226 = scmp.ne.s32.totalorder %s212, %s213
      %p227 = scmp.eq.s32.totalorder %s22, 3
      %p228 = por %p226, %p227
      %p230 = scmp.ne.s32.totalorder %s213, %s229
      %p231 = scmp.eq.s32.totalorder %s22, 0
      %p232 = por %p230, %p231
      %p233 = scmp.le.s32.totalorder 1, %s16
      %p234 = scmp.lt.s32.totalorder %s16, 5
      %p235 = pnand %p233, %p234
      %p236 = pneg %p235
      // Predicated region
      $region9: #{tpu_custom_call.1} parent=5 // pred_check
        _
      $region10: #{tpu_custom_call.1} parent=5 // pred_check_branch
        %238 = sbr.rel (%p235) target = $region12
      $region11: #{tpu_custom_call.1} parent=5 // pred_region
        %s239 = ssub.s32 %s16, 1
        // Predicated region
        $region13: #{tpu_custom_call.1} parent=11 // pred_check
          %p240 = pneg %p157
        $region14: #{tpu_custom_call.1} parent=11 // pred_check_branch
          %242 = sbr.rel (%p240) target = $region16
        $region15: #{tpu_custom_call.1} parent=11 // pred_region
          _
        $region16: #{tpu_custom_call.1} parent=11 // pred_fallthru
          _
        // Predicated region
        $region17: #{tpu_custom_call.1} parent=11 // pred_check
          %p243 = pneg %p178
        $region18: #{tpu_custom_call.1} parent=11 // pred_check_branch
          %245 = sbr.rel (%p243) target = $region20
        $region19: #{tpu_custom_call.1} parent=11 // pred_region
          _
        $region20: #{tpu_custom_call.1} parent=11 // pred_fallthru
          _
        // Predicated region
        $region21: #{tpu_custom_call.1} parent=11 // pred_check
          %p246 = pneg %p199
        $region22: #{tpu_custom_call.1} parent=11 // pred_check_branch
          %248 = sbr.rel (%p246) target = $region24
        $region23: #{tpu_custom_call.1} parent=11 // pred_region
          _
        $region24: #{tpu_custom_call.1} parent=11 // pred_fallthru
          _
      $region12: #{tpu_custom_call.1} parent=5 // pred_fallthru
        _
      %p249 = scmp.lt.s32.totalorder %s16, 4
      // Predicated region
      $region25: #{tpu_custom_call.1} parent=5 // pred_check
        %p250 = pneg %p249
      $region26: #{tpu_custom_call.1} parent=5 // pred_check_branch
        %252 = sbr.rel (%p250) target = $region28
      $region27: #{tpu_custom_call.1} parent=5 // pred_region
        // Predicated region
        $region29: #{tpu_custom_call.1} parent=27 // pred_check
          %p253 = pneg %p50
        $region30: #{tpu_custom_call.1} parent=27 // pred_check_branch
          %255 = sbr.rel (%p253) target = $region32
        $region31: #{tpu_custom_call.1} parent=27 // pred_region
          %p256 = scmp.lt.s32.totalorder %s23, 1
          %s257 = scalar_select %p256, %s23, 1
          %p258 = scmp.lt.s32.totalorder %s24, 1
          %s259 = scalar_select %p258, %s24, 1
          %s260 = smul.addr %s257, 2
          %s261 = sadd.s32 %s259, %s260
          %s262 = scalar_lea.vmem %s0, %s261
        $region32: #{tpu_custom_call.1} parent=27 // pred_fallthru
          _
        // Predicated region
        $region33: #{tpu_custom_call.1} parent=27 // pred_check
          %p263 = pneg %p76
        $region34: #{tpu_custom_call.1} parent=27 // pred_check_branch
          %265 = sbr.rel (%p263) target = $region36
        $region35: #{tpu_custom_call.1} parent=27 // pred_region
          %p266 = scmp.lt.s32.totalorder %s24, 1
          %s267 = scalar_select %p266, %s24, 1
          %s268 = scalar_lea.vmem %s1, %s267
        $region36: #{tpu_custom_call.1} parent=27 // pred_fallthru
          _
        // Predicated region
        $region37: #{tpu_custom_call.1} parent=27 // pred_check
          %p269 = pneg %p102
        $region38: #{tpu_custom_call.1} parent=27 // pred_check_branch
          %271 = sbr.rel (%p269) target = $region40
        $region39: #{tpu_custom_call.1} parent=27 // pred_region
          %p272 = scmp.lt.s32.totalorder %s23, 1
          %s273 = scalar_select %p272, %s23, 1
          %s274 = scalar_lea.vmem %s2, %s273
        $region40: #{tpu_custom_call.1} parent=27 // pred_fallthru
          _
        // Predicated region
        $region41: #{tpu_custom_call.1} parent=27 // pred_check
          %p275 = pneg %p130
        $region42: #{tpu_custom_call.1} parent=27 // pred_check_branch
          %277 = sbr.rel (%p275) target = $region44
        $region43: #{tpu_custom_call.1} parent=27 // pred_region
          %s278 = smul.u32 16, %s24
          %p279 = scmp.lt.s32.totalorder %s23, 1
          %s280 = scalar_select %p279, %s23, 1
          %p281 = scmp.lt.s32.totalorder %s278, 31
          %s282 = scalar_select %p281, %s278, 31
          %s283 = smul.addr %s280, 32
          %s284 = sadd.s32 %s282, %s283
          %s285 = smul.addr %s284, 8
          %s286 = scalar_lea.vmem %s3, %s285
          %s287 = smul.u32 16, %s24
        $region44: #{tpu_custom_call.1} parent=27 // pred_fallthru
          _
      $region28: #{tpu_custom_call.1} parent=5 // pred_fallthru
        _
      %p288 = scmp.le.s32.totalorder 1, %s16
      %p289 = scmp.lt.s32.totalorder %s16, 5
      %p290 = pnand %p288, %p289
      %p291 = pneg %p290
      // Predicated region
      $region45: #{tpu_custom_call.1} parent=5 // pred_check
        _
      $region46: #{tpu_custom_call.1} parent=5 // pred_check_branch
        %293 = sbr.rel (%p290) target = $region48
      $region47: #{tpu_custom_call.1} parent=5 // pred_region
        %s294 = ssub.s32 %s16, 1
        %p295 = scmp.lt.s32.totalorder %s25, 1
        %s296 = scalar_select %p295, %s25, 1
        %p297 = scmp.lt.s32.totalorder %s26, 1
        %s298 = scalar_select %p297, %s26, 1
        %s299 = smul.addr %s296, 2
        %s300 = sadd.s32 %s298, %s299
        %s301 = scalar_lea.vmem %s0, %s300
        %p302 = pneg %p56
        %p303 = pneg %p53
        %p304 = scmp.lt.s32.totalorder %s26, 1
        %s305 = scalar_select %p304, %s26, 1
        %s306 = scalar_lea.vmem %s1, %s305
        %p307 = pneg %p82
        %p308 = pneg %p79
        %p309 = scmp.lt.s32.totalorder %s25, 1
        %s310 = scalar_select %p309, %s25, 1
        %s311 = scalar_lea.vmem %s2, %s310
        %p312 = pneg %p108
        %p313 = pneg %p105
        %s314 = smul.u32 16, %s26
        %p315 = scmp.lt.s32.totalorder %s25, 1
        %s316 = scalar_select %p315, %s25, 1
        %p317 = scmp.lt.s32.totalorder %s314, 31
        %s318 = scalar_select %p317, %s314, 31
        %s319 = smul.addr %s316, 32
        %s320 = sadd.s32 %s318, %s319
        %s321 = smul.addr %s320, 8
        %s322 = scalar_lea.vmem %s3, %s321
        %p323 = pneg %p136
        %p324 = pneg %p133
        %p325 = pneg %p157
        %p326 = pneg %p154
        %p327 = pneg %p178
        %p328 = pneg %p175
        %p329 = pneg %p199
        %p330 = pneg %p196
        %p331 = pneg %p225
        %p332 = pneg %p222
        %s333 = sand.u32 %s212, 1
        %s334 = scalar_lea.sflag [#allocation4], %s333
        %s335 = sand.u32 %s212, 1
        %s336 = scalar_lea.vmem [#allocation3], %s335
        %p337 = scmp.lt.s32.totalorder %s25, 1
        %s338 = scalar_select %p337, %s25, 1
        %p339 = scmp.lt.s32.totalorder %s26, 1
        %s340 = scalar_select %p339, %s26, 1
        %s341 = smul.addr %s338, 2
        %s342 = sadd.s32 %s340, %s341
        %s343 = scalar_lea.vmem %s0, %s342
        %p344 = scmp.lt.s32.totalorder %s26, 1
        %s345 = scalar_select %p344, %s26, 1
        %s346 = scalar_lea.vmem %s1, %s345
        %p347 = scmp.lt.s32.totalorder %s25, 1
        %s348 = scalar_select %p347, %s25, 1
        %s349 = scalar_lea.vmem %s2, %s348
        %s350 = smul.u32 16, %s26
        %p351 = scmp.lt.s32.totalorder %s25, 1
        %s352 = scalar_select %p351, %s25, 1
        %p353 = scmp.lt.s32.totalorder %s350, 31
        %s354 = scalar_select %p353, %s350, 31
        %s355 = smul.addr %s352, 32
        %s356 = sadd.s32 %s354, %s355
        %s357 = smul.addr %s356, 8
        %s358 = scalar_lea.vmem %s3, %s357
        %s359 = smul.u32 16, %s26
        %p360 = scmp.eq.s32.totalorder %s26, 0
        // Predicated region
        $region49: #{tpu_custom_call.1} parent=47 // pred_check
          %p361 = pneg %p360
        $region50: #{tpu_custom_call.1} parent=47 // pred_check_branch
          %363 = sbr.rel (%p361) target = $region52
        $region51: #{tpu_custom_call.1} parent=47 // pred_region
          %vm364 = vcmask 25600
          %365 = vst.msk [vmem:[#allocation2] sm:$0x3] %vm364, 0.0
        $region52: #{tpu_custom_call.1} parent=47 // pred_fallthru
          _
        %v366 = vld [vmem:[%s343] sm:$0x1]
        %v367 = vld [vmem:[%s346] sm:$0x1]
        %v368 = vmul.f32 %v366, %v367
        %v370 = vlaneseq
        %v371 = vshrl.u32 %v370, 7
        %v372 = vsub.s32 0, %v371
        %v373 = vrot.slane %v368, %v372
        %vm375 = vcmask 1040384
        %v376 = vsel %vm375, %v366, %v373
        %v377 = vld [vmem:[#allocation2] sm:$0x3]
        %v378 = vld [vmem:[%s358] sm:$0xff]
        %v379 = vld [vmem:[%s358 + $0x8] sm:$0xff]
        %v380 = vld [vmem:[%s358 + $0x10] sm:$0xff]
        %v381 = vld [vmem:[%s358 + $0x18] sm:$0xff]
        %v382 = vld [vmem:[%s358 + $0x20] sm:$0xff]
        %v383 = vld [vmem:[%s358 + $0x28] sm:$0xff]
        %v384 = vld [vmem:[%s358 + $0x30] sm:$0xff]
        %v385 = vld [vmem:[%s358 + $0x38] sm:$0xff]
        %v386 = vld [vmem:[%s358 + $0x40] sm:$0xff]
        %v387 = vld [vmem:[%s358 + $0x48] sm:$0xff]
        %v388 = vld [vmem:[%s358 + $0x50] sm:$0xff]
        %v389 = vld [vmem:[%s358 + $0x58] sm:$0xff]
        %v390 = vld [vmem:[%s358 + $0x60] sm:$0xff]
        %v391 = vld [vmem:[%s358 + $0x68] sm:$0xff]
        %v392 = vld [vmem:[%s358 + $0x70] sm:$0xff]
        %v393 = vld [vmem:[%s358 + $0x78] sm:$0xff]
        %394 = vmatprep.subr.mxu0 0.0
        %395 = vmatpush1.msra.mxu0 %v378
        %396 = vmatprep.subr.mxu0 0.0
        %397 = vmatpush1.msra.mxu0 %v379
        %398 = vmatprep.subr.mxu0 0.0
        %399 = vmatpush1.msra.mxu0 %v380
        %400 = vmatprep.subr.mxu0 0.0
        %401 = vmatpush1.msra.mxu0 %v381
        %402 = vmatprep.subr.mxu0 0.0
        %403 = vmatpush1.msra.mxu0 %v382
        %404 = vmatprep.subr.mxu0 0.0
        %405 = vmatpush1.msra.mxu0 %v383
        %406 = vmatprep.subr.mxu0 0.0
        %407 = vmatpush1.msra.mxu0 %v384
        %408 = vmatprep.subr.mxu0 0.0
        %409 = vmatpush1.msra.mxu0 %v385
        %410 = vmatprep.subr.mxu0 0.0
        %411 = vmatpush1.msra.mxu0 %v386
        %412 = vmatprep.subr.mxu0 0.0
        %413 = vmatpush1.msra.mxu0 %v387
        %414 = vmatprep.subr.mxu0 0.0
        %415 = vmatpush1.msra.mxu0 %v388
        %416 = vmatprep.subr.mxu0 0.0
        %417 = vmatpush1.msra.mxu0 %v389
        %418 = vmatprep.subr.mxu0 0.0
        %419 = vmatpush1.msra.mxu0 %v390
        %420 = vmatprep.subr.mxu0 0.0
        %421 = vmatpush1.msra.mxu0 %v391
        %422 = vmatprep.subr.mxu0 0.0
        %423 = vmatpush1.msra.mxu0 %v392
        %424 = vmatprep.subr.mxu0 0.0
        %425 = vmatpush1.msra.mxu0 %v393
        %426 = vmatprep.subr.mxu0 0.0
        %427 = vmatpush1.msra.mxu0 0.0
        %428 = vmatprep.subr.mxu0 0.0
        %429 = vmatpush1.msra.mxu0 0.0
        %430 = vmatprep.subr.mxu0 0.0
        %431 = vmatpush1.msra.mxu0 0.0
        %432 = vmatprep.subr.mxu0 0.0
        %433 = vmatpush1.msra.mxu0 0.0
        %434 = vmatprep.subr.mxu0 0.0
        %435 = vmatpush1.msra.mxu0 0.0
        %436 = vmatprep.subr.mxu0 0.0
        %437 = vmatpush1.msra.mxu0 0.0
        %438 = vmatprep.subr.mxu0 0.0
        %439 = vmatpush1.msra.mxu0 0.0
        %440 = vmatprep.subr.mxu0 0.0
        %441 = vmatpush1.msra.mxu0 0.0
        %442 = vmatprep.subr.mxu0 0.0
        %443 = vmatpush1.msra.mxu0 0.0
        %444 = vmatprep.subr.mxu0 0.0
        %445 = vmatpush1.msra.mxu0 0.0
        %446 = vmatprep.subr.mxu0 0.0
        %447 = vmatpush1.msra.mxu0 0.0
        %448 = vmatprep.subr.mxu0 0.0
        %449 = vmatpush1.msra.mxu0 0.0
        %450 = vmatprep.subr.mxu0 0.0
        %451 = vmatpush1.msra.mxu0 0.0
        %452 = vmatprep.subr.mxu0 0.0
        %453 = vmatpush1.msra.mxu0 0.0
        %454 = vmatprep.subr.mxu0 0.0
        %455 = vmatpush1.msra.mxu0 0.0
        %456 = vmatprep.subr.mxu0 0.0
        %457 = vmatpush1.msra.mxu0 0.0
        %458 = vmatprep.mubr.f32.mxu0 0.0
        %459 = vmatmul.mubr.f32.gmra.mrb[0].mxu0 %v376
        %v460 = vpop.f32.mrb[0].mxu0
        %v461 = vadd.f32 0.0, %v460
        %v462 = vpop.f32.mrb[0].mxu0
        %463 = vdwg.mxu0
        %v464 = vadd.f32 %v377, %v461
        %vm465 = vcmask 25600
        %466 = vst.msk [vmem:[#allocation2] sm:$0x3] %vm465, %v464
        %p467 = scmp.eq.s32.totalorder %s26, 1
        // Predicated region
        $region53: #{tpu_custom_call.1} parent=47 // pred_check
          %p468 = pneg %p467
        $region54: #{tpu_custom_call.1} parent=47 // pred_check_branch
          %470 = sbr.rel (%p468) target = $region56
        $region55: #{tpu_custom_call.1} parent=47 // pred_region
          %v471 = vld [vmem:[%s349] sm:$0x1]
          %vm472 = vcmask 122880
          %v473 = vsel %vm472, %v471, 0.0
          %474 = vadd.xlane.f32.xlu0 %v473
          %v475 = vpop.xlane.xlu0 %474
          %v476 = vld [vmem:[#allocation2] sm:$0x3]
          %v478 = vrot.slane %v475, 7
          %v480 = vrcp.pop %v478
          %v481 = vmul.f32 %v476, %v480
          %v483 = vrot.slane %v476, 1
          %v485 = vsub.f32 %v476, %v483
          %v486 = vsub.f32 %v475, 1.0
          %v487 = vmul.f32 %v475, %v486
          %v488 = vrcp.pop %v487
          %v489 = vmul.f32 %v485, %v488
          %v491 = vrot.slane %v489, 7
          %492 = vrot.lane.b32.xlu0 %v491, 4
          %v493 = vpop.permute.xlu0 %492
          %vm495 = vcmask 31744
          %v496 = vsel %vm495, %v481, %v493
          %v497 = vld [vmem:[%s4] sm:$0xff]
          %v498 = vld [vmem:[%s5] sm:$0x1]
          %v500 = vrot.slane %v496, 1
          %vm501 = vcmask 64512
          %v502 = vsel %vm501, %v500, 0
          %504 = vmatprep.subr.mxu0 0.0
          %505 = vmatpush1.msra.mxu0 %v497
          %506 = vmatprep.subr.mxu0 0.0
          %507 = vmatpush1.msra.mxu0 0.0
          %508 = vmatprep.subr.mxu0 0.0
          %509 = vmatpush1.msra.mxu0 0.0
          %510 = vmatprep.subr.mxu0 0.0
          %511 = vmatpush1.msra.mxu0 0.0
          %512 = vmatprep.subr.mxu0 0.0
          %513 = vmatpush1.msra.mxu0 0.0
          %514 = vmatprep.subr.mxu0 0.0
          %515 = vmatpush1.msra.mxu0 0.0
          %516 = vmatprep.subr.mxu0 0.0
          %517 = vmatpush1.msra.mxu0 0.0
          %518 = vmatprep.subr.mxu0 0.0
          %519 = vmatpush1.msra.mxu0 0.0
          %520 = vmatprep.subr.mxu0 0.0
          %521 = vmatpush1.msra.mxu0 0.0
          %522 = vmatprep.subr.mxu0 0.0
          %523 = vmatpush1.msra.mxu0 0.0
          %524 = vmatprep.subr.mxu0 0.0
          %525 = vmatpush1.msra.mxu0 0.0
          %526 = vmatprep.subr.mxu0 0.0
          %527 = vmatpush1.msra.mxu0 0.0
          %528 = vmatprep.subr.mxu0 0.0
          %529 = vmatpush1.msra.mxu0 0.0
          %530 = vmatprep.subr.mxu0 0.0
          %531 = vmatpush1.msra.mxu0 0.0
          %532 = vmatprep.subr.mxu0 0.0
          %533 = vmatpush1.msra.mxu0 0.0
          %534 = vmatprep.subr.mxu0 0.0
          %535 = vmatpush1.msra.mxu0 0.0
          %536 = vmatprep.subr.mxu0 0.0
          %537 = vmatpush1.msra.mxu0 0.0
          %538 = vmatprep.subr.mxu0 0.0
          %539 = vmatpush1.msra.mxu0 0.0
          %540 = vmatprep.subr.mxu0 0.0
          %541 = vmatpush1.msra.mxu0 0.0
          %542 = vmatprep.subr.mxu0 0.0
          %543 = vmatpush1.msra.mxu0 0.0
          %544 = vmatprep.subr.mxu0 0.0
          %545 = vmatpush1.msra.mxu0 0.0
          %546 = vmatprep.subr.mxu0 0.0
          %547 = vmatpush1.msra.mxu0 0.0
          %548 = vmatprep.subr.mxu0 0.0
          %549 = vmatpush1.msra.mxu0 0.0
          %550 = vmatprep.subr.mxu0 0.0
          %551 = vmatpush1.msra.mxu0 0.0
          %552 = vmatprep.subr.mxu0 0.0
          %553 = vmatpush1.msra.mxu0 0.0
          %554 = vmatprep.subr.mxu0 0.0
          %555 = vmatpush1.msra.mxu0 0.0
          %556 = vmatprep.subr.mxu0 0.0
          %557 = vmatpush1.msra.mxu0 0.0
          %558 = vmatprep.subr.mxu0 0.0
          %559 = vmatpush1.msra.mxu0 0.0
          %560 = vmatprep.subr.mxu0 0.0
          %561 = vmatpush1.msra.mxu0 0.0
          %562 = vmatprep.subr.mxu0 0.0
          %563 = vmatpush1.msra.mxu0 0.0
          %564 = vmatprep.subr.mxu0 0.0
          %565 = vmatpush1.msra.mxu0 0.0
          %566 = vmatprep.subr.mxu0 0.0
          %567 = vmatpush1.msra.mxu0 0.0
          %568 = vmatprep.mubr.f32.mxu0 0.0
          %569 = vmatmul.mubr.f32.gmra.mrb[0].mxu0 %v502
          %v570 = vpop.f32.mrb[0].mxu0
          %v571 = vadd.f32 %v498, %v570
          %v572 = vpop.f32.mrb[0].mxu0
          %573 = vdwg.mxu0
          %vm574 = vcmp.gt.f32.partialorder %v571, 0.0
          %v575 = vmul.f32 %v571, 0.01
          %v576 = vsel %vm574, %v571, %v575
          %v577 = vld [vmem:[%s6] sm:$0xff]
          %v578 = vld [vmem:[%s6 + $0x8] sm:$0xff]
          %v579 = vld [vmem:[%s6 + $0x10] sm:$0xff]
          %v580 = vld [vmem:[%s6 + $0x18] sm:$0xff]
          %vm581 = vcmask 261120
          %v583 = vsel %vm581, %v576, 0
          %585 = vmatprep.subr.mxu0 0.0
          %586 = vmatpush1.msra.mxu0 %v577
          %587 = vmatprep.subr.mxu0 0.0
          %588 = vmatpush1.msra.mxu0 %v578
          %589 = vmatprep.subr.mxu0 0.0
          %590 = vmatpush1.msra.mxu0 %v579
          %591 = vmatprep.subr.mxu0 0.0
          %592 = vmatpush1.msra.mxu0 %v580
          %593 = vmatprep.subr.mxu0 0.0
          %594 = vmatpush1.msra.mxu0 0.0
          %595 = vmatprep.subr.mxu0 0.0
          %596 = vmatpush1.msra.mxu0 0.0
          %597 = vmatprep.subr.mxu0 0.0
          %598 = vmatpush1.msra.mxu0 0.0
          %599 = vmatprep.subr.mxu0 0.0
          %600 = vmatpush1.msra.mxu0 0.0
          %601 = vmatprep.subr.mxu0 0.0
          %602 = vmatpush1.msra.mxu0 0.0
          %603 = vmatprep.subr.mxu0 0.0
          %604 = vmatpush1.msra.mxu0 0.0
          %605 = vmatprep.subr.mxu0 0.0
          %606 = vmatpush1.msra.mxu0 0.0
          %607 = vmatprep.subr.mxu0 0.0
          %608 = vmatpush1.msra.mxu0 0.0
          %609 = vmatprep.subr.mxu0 0.0
          %610 = vmatpush1.msra.mxu0 0.0
          %611 = vmatprep.subr.mxu0 0.0
          %612 = vmatpush1.msra.mxu0 0.0
          %613 = vmatprep.subr.mxu0 0.0
          %614 = vmatpush1.msra.mxu0 0.0
          %615 = vmatprep.subr.mxu0 0.0
          %616 = vmatpush1.msra.mxu0 0.0
          %617 = vmatprep.subr.mxu0 0.0
          %618 = vmatpush1.msra.mxu0 0.0
          %619 = vmatprep.subr.mxu0 0.0
          %620 = vmatpush1.msra.mxu0 0.0
          %621 = vmatprep.subr.mxu0 0.0
          %622 = vmatpush1.msra.mxu0 0.0
          %623 = vmatprep.subr.mxu0 0.0
          %624 = vmatpush1.msra.mxu0 0.0
          %625 = vmatprep.subr.mxu0 0.0
          %626 = vmatpush1.msra.mxu0 0.0
          %627 = vmatprep.subr.mxu0 0.0
          %628 = vmatpush1.msra.mxu0 0.0
          %629 = vmatprep.subr.mxu0 0.0
          %630 = vmatpush1.msra.mxu0 0.0
          %631 = vmatprep.subr.mxu0 0.0
          %632 = vmatpush1.msra.mxu0 0.0
          %633 = vmatprep.subr.mxu0 0.0
          %634 = vmatpush1.msra.mxu0 0.0
          %635 = vmatprep.subr.mxu0 0.0
          %636 = vmatpush1.msra.mxu0 0.0
          %637 = vmatprep.subr.mxu0 0.0
          %638 = vmatpush1.msra.mxu0 0.0
          %639 = vmatprep.subr.mxu0 0.0
          %640 = vmatpush1.msra.mxu0 0.0
          %641 = vmatprep.subr.mxu0 0.0
          %642 = vmatpush1.msra.mxu0 0.0
          %643 = vmatprep.subr.mxu0 0.0
          %644 = vmatpush1.msra.mxu0 0.0
          %645 = vmatprep.subr.mxu0 0.0
          %646 = vmatpush1.msra.mxu0 0.0
          %647 = vmatprep.subr.mxu0 0.0
          %648 = vmatpush1.msra.mxu0 0.0
          %649 = vmatprep.mubr.f32.mxu0 0.0
          %650 = vmatmul.mubr.f32.gmra.mrb[0].mxu0 %v583
          %v651 = vpop.f32.mrb[0].mxu0
          %v652 = vadd.f32 0.0, %v651
          %v653 = vpop.f32.mrb[0].mxu0
          %654 = vdwg.mxu0
          %v655 = vadd.f32 %v571, %v652
          %vm656 = vcmask 253952
          %657 = vst.msk [vmem:[%s336] sm:$0x1] %vm656, %v655
        $region56: #{tpu_custom_call.1} parent=47 // pred_fallthru
          _
        %s658 = sand.u32 %s212, 1
        %s659 = scalar_lea.sflag [#allocation4], %s658
        %s660 = sand.u32 %s212, 1
        %s661 = scalar_lea.vmem [#allocation3], %s660
        // Predicated region
        $region57: #{tpu_custom_call.1} parent=47 // pred_check
          %p662 = pneg %p222
        $region58: #{tpu_custom_call.1} parent=47 // pred_check_branch
          %664 = sbr.rel (%p662) target = $region60
        $region59: #{tpu_custom_call.1} parent=47 // pred_region
          %s666 = ssub.s32 16, 16
          %667 = vsyncadd %s659, %s666
          %s668 = smul.addr %s25, 16
          %s669 = scalar_lea.hbm %s7, %s668
          %s671 = sshll.u32 %s661, 4
          %s672 = int_to_ptr.vmem [resolvable:$true] %s671
          %674 = dma.vmem_to_hbm [thread:$0]  %s672, 16, %s669, %s659
        $region60: #{tpu_custom_call.1} parent=47 // pred_fallthru
          _
      $region48: #{tpu_custom_call.1} parent=5 // pred_fallthru
        _
      %p675 = scmp.le.s32.totalorder 2, %s16
      // Predicated region
      $region61: #{tpu_custom_call.1} parent=5 // pred_check
        %p676 = pneg %p675
      $region62: #{tpu_custom_call.1} parent=5 // pred_check_branch
        %678 = sbr.rel (%p676) target = $region64
      $region63: #{tpu_custom_call.1} parent=5 // pred_region
        %s679 = ssub.s32 %s16, 2
        // Predicated region
        $region65: #{tpu_custom_call.1} parent=63 // pred_check
          %p680 = pneg %p228
        $region66: #{tpu_custom_call.1} parent=63 // pred_check_branch
          %682 = sbr.rel (%p680) target = $region68
        $region67: #{tpu_custom_call.1} parent=63 // pred_region
          %s683 = sand.u32 %s213, 1
          %s684 = scalar_lea.sflag [#allocation4], %s683
          %s685 = sand.u32 %s213, 1
          %s686 = scalar_lea.vmem [#allocation3], %s685
          %687 = dma.done %s684, 16
        $region68: #{tpu_custom_call.1} parent=63 // pred_fallthru
          _
      $region64: #{tpu_custom_call.1} parent=5 // pred_fallthru
        _
    $region6: #{tpu_custom_call.1} parent=1 // loop_footer
      %s20 = sadd.s32 1, %s16
    $region7: #{tpu_custom_call.1} parent=1 // loop_footer_branch
      %15 = sbr.rel target = $region3
    $region8: #{tpu_custom_call.1} parent=1 // loop_exit
      _
    %688 = vsyncpa [#allocation4], 1
    %s689 = scalar_lea.sflag [#allocation4], 1
    %690 = vsyncpa %s689, 1

</llo_original>
